<compile_context>
chip_gen: v7x
topology: tpu7x:2x2x1
jax: 0.10.0
libtpu: 0.0.40
codegen_flags: <defaults>
</compile_context>

<pallas_src>
import functools

import numpy as np
import jax
import jax.numpy as jnp
from jax.experimental import pallas as pl
from jax.experimental.pallas import tpu as pltpu


def _sinusoidal_kernel(fmask_ref, phase_ref, x_ref, out_ref, *, k):
    # fmask_ref: (k, W) f32 constant. Row j holds freqs2 on lane-group j, zeros elsewhere
    #            (freqs2 = [freqs, freqs] tiled over the k lane groups, W = k * dim_out).
    # phase_ref: (1, W) f32 constant: [0]*half + [pi/2]*half, tiled k times
    #            (cos(t) == sin(t + pi/2) -> single fused sin pass).
    # x_ref:     (T, k) f32 positions (k consecutive positions packed per kernel row).
    # out_ref:   (T, W) embeddings.
    x = x_ref[...]                                             # (T, k)
    # Lane-group expansion of x via masked multiply-adds: each output lane L belongs to
    # exactly one group j = L // dim_out, so the sum reproduces x[r, L//dim_out] * freqs2[L].
    emb = phase_ref[...] + x[:, 0:1] * fmask_ref[0:1, :]       # (T, W) lane/sublane broadcasts
    for j in range(1, k):                                      # k <= 16, unrolled at trace time
        emb = emb + x[:, j:j + 1] * fmask_ref[j:j + 1, :]
    out_ref[...] = jnp.sin(emb).astype(out_ref.dtype)          # single full-width store


def _pick_block_rows(n_rows: int, row_bytes: int) -> int:
    """Rows per grid step: ~8 MiB output blocks, multiple of 8, but keep >= ~4 grid steps
    (2 per v7x TensorCore) when there is enough work. For tiny inputs use one exact block
    (block dim == full array dim is always a legal BlockSpec)."""
    if n_rows <= 8:
        return max(1, n_rows)
    target = max(8, (((8 * 1024 * 1024) // max(1, row_bytes)) // 8) * 8)
    quarter = max(8, pl.cdiv(pl.cdiv(n_rows, 4), 8) * 8)
    return max(8, min(target, quarter, (n_rows // 8) * 8))


def sinusoidal_pos_emb(x: jax.Array, dim: int, *, block_rows: int | None = None,
                       out_dtype=jnp.float32) -> jax.Array:
    """Pallas equivalent of SinusoidalPosEmb(dim)(x) for 1-D x. Returns (N, 2*(dim//2))."""
    assert x.ndim == 1, "expected a 1-D batch of scalar positions"
    half_dim = dim // 2
    if half_dim < 2:
        # torch module divides by (half_dim - 1); dim < 4 is ill-defined there too.
        raise ValueError("SinusoidalPosEmb requires dim >= 4")
    dim_out = 2 * half_dim          # == dim for even dim (matches torch cat(sin, cos))
    n = x.shape[0]

    # Compile-time frequency / phase tables (f32, like torch; no in-kernel iota/exp).
    freqs = np.exp(np.arange(half_dim, dtype=np.float32)
                   * np.float32(-(np.log(10000.0) / (half_dim - 1)))).astype(np.float32)
    freqs2 = np.concatenate([freqs, freqs])                                   # (dim_out,)
    phase1 = np.concatenate([np.zeros(half_dim, np.float32),
                             np.full(half_dim, np.float32(np.pi / 2))])       # (dim_out,)

    # Lane packing: pack k consecutive positions per kernel row so the output block is a
    # full 128 lanes wide. Only when unpacking is a free row-major reshape (n % k == 0)
    # and the per-row expansion stays cheap (k <= 16).
    k = 1
    if dim_out < 128 and 128 % dim_out == 0:
        k_cand = 128 // dim_out
        if k_cand <= 16 and n >= k_cand and n % k_cand == 0:
            k = k_cand
    W = k * dim_out

    lane_group = np.arange(W) // dim_out                                      # (W,)
    freqs_tiled = np.tile(freqs2, k)                                          # (W,)
    fmask = np.where(lane_group[None, :] == np.arange(k)[:, None],
                     freqs_tiled[None, :], np.float32(0.0)).astype(np.float32)  # (k, W)
    phase = np.tile(phase1, k).reshape(1, W).astype(np.float32)               # (1, W)

    n_rows = n // k
    x2 = x.astype(jnp.float32).reshape(n_rows, k)

    itemsize = int(np.dtype(out_dtype).itemsize)
    if block_rows is None:
        blk = _pick_block_rows(n_rows, W * itemsize)
    else:
        blk = (max(1, min(block_rows, n_rows)) if n_rows <= 8
               else max(8, (min(block_rows, (n_rows // 8) * 8) // 8) * 8))

    grid = (pl.cdiv(n_rows, blk),)   # ragged last block: Pallas masks boundary stores

    out = pl.pallas_call(
        functools.partial(_sinusoidal_kernel, k=k),
        out_shape=jax.ShapeDtypeStruct((n_rows, W), out_dtype),
        grid_spec=pltpu.PrefetchScalarGridSpec(
            num_scalar_prefetch=0,
            grid=grid,
            in_specs=[
                pl.BlockSpec((k, W), lambda i: (0, 0)),      # fmask: same block every step
                pl.BlockSpec((1, W), lambda i: (0, 0)),      # phase: same block every step
                pl.BlockSpec((blk, k), lambda i: (i, 0)),    # x tile (boundary rows masked)
            ],
            out_specs=pl.BlockSpec((blk, W), lambda i: (i, 0)),
        ),
        compiler_params=pltpu.CompilerParams(
            # Independent rows: let v7x's two TensorCores split the grid; no-op elsewhere.
            dimension_semantics=("parallel",),
            # Raise v5e's 16 MiB scoped default so double-buffered ~8 MiB output blocks fit.
            vmem_limit_bytes=32 * 1024 * 1024,
        ),
        cost_estimate=pl.CostEstimate(
            flops=2 * k * n_rows * W,          # k masked multiply-adds per output element
            transcendentals=n_rows * W,        # one fused sin per output element
            bytes_accessed=4 * n + itemsize * n_rows * W + 4 * (k + 1) * W,
        ),
    )(jnp.asarray(fmask), jnp.asarray(phase), x2)

    # Row-major relabel of the packed layout back to (N, dim_out); identity when k == 1.
    return out.reshape(n, dim_out)


def _reference(x: jax.Array, dim: int) -> jax.Array:
    half_dim = dim // 2
    emb = np.log(10000.0) / (half_dim - 1)
    emb = jnp.exp(jnp.arange(half_dim, dtype=jnp.float32) * -emb)
    emb = x.astype(jnp.float32)[:, None] * emb[None, :]
    return jnp.concatenate((jnp.sin(emb), jnp.cos(emb)), axis=-1)


if __name__ == "__main__":
    key = jax.random.PRNGKey(0)
    k0, k1, k2, k3 = jax.random.split(key, 4)
    # atol 3e-5: cos(t) is computed as sin(t + pi/2), which costs <= ~1 ulp of the argument.

    # Case 1: toy timestep embedding (lane-dense packed path: dim_out=32 -> k=4).
    dim, n = 32, 8
    x = jax.random.uniform(k0, (n,), dtype=jnp.float32) * 100.0
    out = jax.block_until_ready(sinusoidal_pos_emb(x, dim))
    ref = _reference(x, dim)
    assert out.shape == (n, dim), out.shape
    assert out.dtype == jnp.float32, out.dtype
    np.testing.assert_allclose(np.asarray(out), np.asarray(ref), rtol=1e-5, atol=3e-5)

    # Case 2: packed path with several packed rows.
    n2 = 20
    x2 = jax.random.uniform(k1, (n2,), dtype=jnp.float32) * 100.0
    out2 = jax.block_until_ready(sinusoidal_pos_emb(x2, dim))
    assert out2.shape == (n2, dim), out2.shape
    np.testing.assert_allclose(np.asarray(out2), np.asarray(_reference(x2, dim)),
                               rtol=1e-5, atol=3e-5)

    # Case 3: unpacked fallback (n % k != 0) + ragged grid exercising masked boundary stores.
    n3 = 18
    x3 = jax.random.uniform(k2, (n3,), dtype=jnp.float32) * 100.0
    out3 = jax.block_until_ready(sinusoidal_pos_emb(x3, dim, block_rows=8))
    assert out3.shape == (n3, dim), out3.shape
    np.testing.assert_allclose(np.asarray(out3), np.asarray(_reference(x3, dim)),
                               rtol=1e-5, atol=3e-5)

    # Case 4: large dim (already lane-dense, no packing), multi-step grid.
    dim4, n4 = 256, 16
    x4 = jax.random.uniform(k3, (n4,), dtype=jnp.float32) * 100.0
    out4 = jax.block_until_ready(sinusoidal_pos_emb(x4, dim4, block_rows=8))
    assert out4.shape == (n4, dim4), out4.shape
    np.testing.assert_allclose(np.asarray(out4), np.asarray(_reference(x4, dim4)),
                               rtol=1e-5, atol=3e-5)

    # Case 5: bf16 output (halves HBM writeback for bf16 consumers downstream).
    out5 = jax.block_until_ready(sinusoidal_pos_emb(x, dim, out_dtype=jnp.bfloat16))
    assert out5.dtype == jnp.bfloat16, out5.dtype
    np.testing.assert_allclose(np.asarray(out5.astype(jnp.float32)), np.asarray(ref),
                               rtol=2e-2, atol=2e-2)

    print("KERNEL_OK")
</pallas_src>

<mosaic_0001>
module attributes {stable_mosaic.version = 11 : i64} {
  func.func @_sinusoidal_kernel(%arg0: i32, %arg1: memref<4x128xf32, #tpu.memory_space<vmem>>, %arg2: memref<1x128xf32, #tpu.memory_space<vmem>>, %arg3: memref<2x4xf32, #tpu.memory_space<vmem>>, %arg4: memref<2x128xf32, #tpu.memory_space<vmem>>) attributes {dimension_semantics = [#tpu.dimension_semantics<parallel>], iteration_bounds = array<i64: 1>, scalar_prefetch = 0 : i64, scratch_operands = 0 : i64, tpu.core_type = #tpu.core_type<tc>, window_params = [{pipeline_mode = #tpu.pipeline_mode<synchronous>, transform_indices = @transform_0, window_bounds = array<i64: 4, 128>}, {pipeline_mode = #tpu.pipeline_mode<synchronous>, transform_indices = @transform_1, window_bounds = array<i64: 1, 128>}, {transform_indices = @transform_2, window_bounds = array<i64: 2, 4>}, {transform_indices = @transform_3, window_bounds = array<i64: 2, 128>}]} {
    %c0 = arith.constant 0 : index
    %c0_0 = arith.constant 0 : index
    %0 = vector.load %arg3[%c0, %c0_0] : memref<2x4xf32, #tpu.memory_space<vmem>>, vector<2x4xf32>
    %c0_1 = arith.constant 0 : index
    %c0_2 = arith.constant 0 : index
    %1 = vector.load %arg2[%c0_1, %c0_2] : memref<1x128xf32, #tpu.memory_space<vmem>>, vector<1x128xf32>
    %2 = vector.extract_strided_slice %0 {offsets = [0, 0], sizes = [2, 1], strides = [1, 1]} : vector<2x4xf32> to vector<2x1xf32>
    %c0_3 = arith.constant 0 : index
    %c0_4 = arith.constant 0 : index
    %3 = vector.load %arg1[%c0_3, %c0_4] : memref<4x128xf32, #tpu.memory_space<vmem>>, vector<1x128xf32>
    %4 = vector.broadcast %2 : vector<2x1xf32> to vector<2x128xf32>
    %5 = vector.broadcast %3 : vector<1x128xf32> to vector<2x128xf32>
    %6 = arith.mulf %4, %5 : vector<2x128xf32>
    %7 = vector.broadcast %1 : vector<1x128xf32> to vector<2x128xf32>
    %8 = arith.addf %7, %6 : vector<2x128xf32>
    %9 = vector.extract_strided_slice %0 {offsets = [0, 1], sizes = [2, 1], strides = [1, 1]} : vector<2x4xf32> to vector<2x1xf32>
    %c1 = arith.constant 1 : index
    %c0_5 = arith.constant 0 : index
    %10 = vector.load %arg1[%c1, %c0_5] : memref<4x128xf32, #tpu.memory_space<vmem>>, vector<1x128xf32>
    %11 = vector.broadcast %9 : vector<2x1xf32> to vector<2x128xf32>
    %12 = vector.broadcast %10 : vector<1x128xf32> to vector<2x128xf32>
    %13 = arith.mulf %11, %12 : vector<2x128xf32>
    %14 = arith.addf %8, %13 : vector<2x128xf32>
    %15 = vector.extract_strided_slice %0 {offsets = [0, 2], sizes = [2, 1], strides = [1, 1]} : vector<2x4xf32> to vector<2x1xf32>
    %c2 = arith.constant 2 : index
    %c0_6 = arith.constant 0 : index
    %16 = vector.load %arg1[%c2, %c0_6] : memref<4x128xf32, #tpu.memory_space<vmem>>, vector<1x128xf32>
    %17 = vector.broadcast %15 : vector<2x1xf32> to vector<2x128xf32>
    %18 = vector.broadcast %16 : vector<1x128xf32> to vector<2x128xf32>
    %19 = arith.mulf %17, %18 : vector<2x128xf32>
    %20 = arith.addf %14, %19 : vector<2x128xf32>
    %21 = vector.extract_strided_slice %0 {offsets = [0, 3], sizes = [2, 1], strides = [1, 1]} : vector<2x4xf32> to vector<2x1xf32>
    %c3 = arith.constant 3 : index
    %c0_7 = arith.constant 0 : index
    %22 = vector.load %arg1[%c3, %c0_7] : memref<4x128xf32, #tpu.memory_space<vmem>>, vector<1x128xf32>
    %23 = vector.broadcast %21 : vector<2x1xf32> to vector<2x128xf32>
    %24 = vector.broadcast %22 : vector<1x128xf32> to vector<2x128xf32>
    %25 = arith.mulf %23, %24 : vector<2x128xf32>
    %26 = arith.addf %20, %25 : vector<2x128xf32>
    %27 = math.sin %26 : vector<2x128xf32>
    %c0_8 = arith.constant 0 : index
    %c0_9 = arith.constant 0 : index
    %28 = vector.load %arg4[%c0_8, %c0_9] : memref<2x128xf32, #tpu.memory_space<vmem>>, vector<2x128xf32>
    tpu.vector_store %arg4[%c0_8, %c0_9], %27 {strides = array<i32>} : memref<2x128xf32, #tpu.memory_space<vmem>>, vector<2x128xf32>,
    return
  }
  func.func @transform_0(%arg0: i32) -> (i32, i32) {
    %c0_i32 = arith.constant 0 : i32
    %c0_i32_0 = arith.constant 0 : i32
    %c0_i32_1 = arith.constant 0 : i32
    return %c0_i32, %c0_i32_0 : i32, i32
  }
  func.func @transform_1(%arg0: i32) -> (i32, i32) {
    %c0_i32 = arith.constant 0 : i32
    %c0_i32_0 = arith.constant 0 : i32
    %c0_i32_1 = arith.constant 0 : i32
    return %c0_i32, %c0_i32_0 : i32, i32
  }
  func.func @transform_2(%arg0: i32) -> (i32, i32) {
    %c0_i32 = arith.constant 0 : i32
    %c0_i32_0 = arith.constant 0 : i32
    return %arg0, %c0_i32 : i32, i32
  }
  func.func @transform_3(%arg0: i32) -> (i32, i32) {
    %c0_i32 = arith.constant 0 : i32
    %c0_i32_0 = arith.constant 0 : i32
    return %arg0, %c0_i32 : i32, i32
  }
}

</mosaic_0001>

<llo_original>
// kernel: tpu_custom_call.1
$region0: #{tpu_custom_call.1}
  #allocation0 [shape = 'u32[]', space=smem, size = 0x4, offset = 0x4, fixed_abs, tag = 'smem constant byte address 0x4 - core index']
  #allocation1 [shape = 'u32[144,128]{1,0:T(1,128)}', space=vmem, size = 0x12000, scoped, tag = 'internal scratch']
  %s0 = inlined_call_operand.hbm [shape: f32[4,128], index: 0, kind: input, shape index: {}]
  %s1 = inlined_call_operand.vmem [shape: f32[1,128], index: 1, kind: input, shape index: {}]
  %s2 = inlined_call_operand.vmem [shape: f32[2,4], index: 2, kind: input, shape index: {}]
  %s3 = inlined_call_operand.hbm [shape: f32[2,128], index: 3, kind: output, shape index: {}]
  %s4 = sld [smem:[#allocation0]]
  $region26: #{tpu_custom_call.1} parent=0
    _
  %s6 = ssub.s32 1, %s4
  %s7 = scalar_select 0, %s6, %s4
  $region1: #{tpu_custom_call.1} parent=0
    #allocation2 [shape = 'u8[2048]{0}', space=vmem, size = 0x800, scoped, tag = 'input window, operand 0, single buffered']
    #allocation3 [shape = 's32[1]{0}', space=sflag, size = 0x4, scoped, tag = 'scoped memory for tpu_custom_call.1']
    #allocation4 [shape = 's32[1]{0}', space=sflag, size = 0x4, scoped, tag = 'scoped memory for tpu_custom_call.1']
    #allocation5 [shape = 'u8[1024]{0}', space=vmem, size = 0x400, scoped, tag = 'output window, operand 0, single buffered']
    %8 = vsyncpa [#allocation3], 0
    %9 = vsyncpa [#allocation4], 0
    // Predicated region
    $region2: #{tpu_custom_call.1} parent=1 // pred_check
      _
    $region3: #{tpu_custom_call.1} parent=1 // pred_check_branch
      %11 = sbr.rel (0) target = $region5
    $region4: #{tpu_custom_call.1} parent=1 // pred_region
      %s13 = ssub.s32 64, 64
      %14 = vsyncadd [#allocation3], %s13
      %s16 = sshll.u32 [#allocation2], 4
      %s17 = int_to_ptr.vmem [resolvable:$true] %s16
      %19 = dma.hbm_to_vmem [thread:$0]  %s0, 64, %s17, [#allocation3]
    $region5: #{tpu_custom_call.1} parent=1 // pred_fallthru
      _
    // Predicated region
    $region6: #{tpu_custom_call.1} parent=1 // pred_check
      _
    $region7: #{tpu_custom_call.1} parent=1 // pred_check_branch
      %21 = sbr.rel (0) target = $region9
    $region8: #{tpu_custom_call.1} parent=1 // pred_region
      _
    $region9: #{tpu_custom_call.1} parent=1 // pred_fallthru
      _
    // Predicated region
    $region10: #{tpu_custom_call.1} parent=1 // pred_check
      _
    $region11: #{tpu_custom_call.1} parent=1 // pred_check_branch
      %23 = sbr.rel (0) target = $region13
    $region12: #{tpu_custom_call.1} parent=1 // pred_region
      _
    $region13: #{tpu_custom_call.1} parent=1 // pred_fallthru
      _
    // Predicated region
    $region14: #{tpu_custom_call.1} parent=1 // pred_check
      _
    $region15: #{tpu_custom_call.1} parent=1 // pred_check_branch
      %25 = sbr.rel (0) target = $region17
    $region16: #{tpu_custom_call.1} parent=1 // pred_region
      %26 = dma.done [#allocation3], 64
    $region17: #{tpu_custom_call.1} parent=1 // pred_fallthru
      _
    %v27 = vld [vmem:[%s2] sm:$0x3]
    %v28 = vld [vmem:[%s1] sm:$0x1]
    %v29 = vld [vmem:[#allocation2] sm:$0x1]
    %31 = vset.pattern.permute.xlu0 0
    %32 = vperm.xlu0 %31, %v27
    %v33 = vpop.permute.xlu0 %32
    %v35 = vlaneseq
    %v36 = vshrl.u32 %v35, 7
    %v37 = vsub.s32 0, %v36
    %v38 = vrot.slane %v29, %v37
    %v39 = vmul.f32 %v33, %v38
    %v41 = vlaneseq
    %v42 = vshrl.u32 %v41, 7
    %v43 = vsub.s32 0, %v42
    %v44 = vrot.slane %v28, %v43
    %v46 = vadd.f32 %v44, %v39
    %v47 = vld [vmem:[#allocation2 + $0x1] sm:$0x1]
    %48 = vset.pattern.permute.xlu0 1
    %49 = vperm.xlu0 %48, %v27
    %v50 = vpop.permute.xlu0 %49
    %v52 = vlaneseq
    %v53 = vshrl.u32 %v52, 7
    %v54 = vsub.s32 0, %v53
    %v55 = vrot.slane %v47, %v54
    %v56 = vmul.f32 %v50, %v55
    %v57 = vadd.f32 %v46, %v56
    %v58 = vld [vmem:[#allocation2 + $0x2] sm:$0x1]
    %59 = vset.pattern.permute.xlu0 2
    %60 = vperm.xlu0 %59, %v27
    %v61 = vpop.permute.xlu0 %60
    %v63 = vlaneseq
    %v64 = vshrl.u32 %v63, 7
    %v65 = vsub.s32 0, %v64
    %v66 = vrot.slane %v58, %v65
    %v67 = vmul.f32 %v61, %v66
    %v68 = vadd.f32 %v57, %v67
    %v69 = vld [vmem:[#allocation2 + $0x3] sm:$0x1]
    %70 = vset.pattern.permute.xlu0 3
    %71 = vperm.xlu0 %70, %v27
    %v72 = vpop.permute.xlu0 %71
    %v74 = vlaneseq
    %v75 = vshrl.u32 %v74, 7
    %v76 = vsub.s32 0, %v75
    %v77 = vrot.slane %v69, %v76
    %v78 = vmul.f32 %v72, %v77
    %v79 = vadd.f32 %v68, %v78
    %v80 = vand.u32 2147483647, %v79
    %vm81 = vcmp.le.f32.partialorder %v80, 0.7853982
    %vm82 = vcmp.lt.s32.totalorder %v79, 0
    %v83 = vand.u32 %v79, 2139095040
    %v84 = vshrl.u32 %v83, 23
    %v85 = vsub.s32 %v84, 127
    %v86 = vand.u32 2147483647, %v79
    %v87 = vand.u32 %v86, 8388607
    %v88 = vor.u32 %v87, 8388608
    %v89 = vsub.s32 0, %v88
    %v90 = vadd.s32 %v85, 1
    %vm91 = vcmp.gt.s32.totalorder %v90, 0
    %v92 = vsel %vm91, %v90, 0
    %v93 = vshrl.u32 %v92, 5
    %v94 = vand.u32 %v92, 31
    %v95 = vsub.s32 32, %v94
    %v96 = vshrl.u32 683565275, %v95
    %v97 = vshll.u32 683565275, %v94
    %v98 = vshrl.u32 2475754826, %v95
    %v99 = vor.u32 %v97, %v98
    %v100 = vshll.u32 2475754826, %v94
    %v101 = vshrl.u32 2131351028, %v95
    %v102 = vor.u32 %v100, %v101
    %v103 = vshll.u32 2131351028, %v94
    %v104 = vshrl.u32 2102212464, %v95
    %v105 = vor.u32 %v103, %v104
    %v106 = vshll.u32 2102212464, %v94
    %v107 = vshrl.u32 920167782, %v95
    %v108 = vor.u32 %v106, %v107
    %v109 = vshll.u32 920167782, %v94
    %v110 = vshrl.u32 1326507024, %v95
    %v111 = vor.u32 %v109, %v110
    %vm112 = vcmp.lt.s32.totalorder %v93, 1
    %vm113 = vcmp.lt.s32.totalorder %v93, 2
    %vm114 = vcmp.lt.s32.totalorder %v93, 3
    %vm115 = vcmp.lt.s32.totalorder %v93, 4
    %v116 = vsel %vm112, %v96, %v99
    %v117 = vsel %vm115, %v105, 2102212464
    %v118 = vsel %vm114, %v102, %v117
    %v119 = vsel %vm113, %v116, %v118
    %v120 = vsel %vm112, %v99, %v102
    %v121 = vsel %vm115, %v108, 920167782
    %v122 = vsel %vm114, %v105, %v121
    %v123 = vsel %vm113, %v120, %v122
    %v124 = vsel %vm112, %v102, %v105
    %v125 = vsel %vm115, %v111, 1326507024
    %v126 = vsel %vm114, %v108, %v125
    %v127 = vsel %vm113, %v124, %v126
    %v128 = vshll.u32 %v88, 8
    %v129 = vmul.u32.u64.compose %v128, %v127
    %v130 = vextract.low.u32 %v129
    %v131 = vextract.high.u32 %v129
    %v132 = vmul.u32.u64.compose %v128, %v123
    %v133 = vextract.low.u32 %v132
    %v134 = vextract.high.u32 %v132
    %v135 = vmul.u32 %v128, %v119
    %v136 = vadd.s32 %v131, %v133
    %vm137 = vc.u32 %v131, %v133
    %v138 = vadd.s32 %v134, 1
    %v139 = vsel %vm137, %v138, %v134
    %v140 = vadd.s32 %v135, %v139
    %v141 = vadd.s32 %v140, 536870912
    %v142 = vshrl.u32 %v141, 30
    %v143 = vshll.u32 %v142, 30
    %v144 = vsub.s32 %v140, %v143
    %vm145 = vcmp.lt.s32.totalorder %v144, 0
    %v146 = vsub.s32 0, %v144
    %v147 = vsel %vm145, %v146, %v144
    %v148 = vclz %v147
    %v149 = vsub.s32 %v148, 2
    %vm150 = vcmp.gt.s32.totalorder 0, %v149
    %v151 = vsel %vm150, 0, %v149
    %v152 = vsub.s32 32, %v151
    %v153 = vshll.u32 %v144, %v151
    %v154 = vshrl.u32 %v136, %v152
    %v155 = vor.u32 %v153, %v154
    %v156 = vsub.s32 4294967266, %v151
    %v157 = vadd.s32 %v156, 127
    %v158 = vshll.u32 %v157, 23
    %v159 = vor.u32 4788187, %v158
    %v160 = vand.u32 2147483647, %v159
    %v162 = vcvt.s32.f32 %v155
    %v163 = vmul.f32 %v162, %v160
    %v164 = vxor.u32 %v163, 2147483648
    %v165 = vsel %vm82, %v164, %v163
    %v166 = vsub.s32 4, %v142
    %v167 = vsel %vm82, %v166, %v142
    %v168 = vsel %vm81, %v79, %v165
    %v169 = vsel %vm81, 0, %v167
    %v170 = vcosq.f32.pop %v168
    %v171 = vsinq.f32.pop %v168
    %vm172 = vweird.f32 %v79
    %v173 = vadd.s32 %v169, 3
    %v174 = vand.u32 %v173, 3
    %vm175 = vcmp.lt.s32.totalorder %v174, 2
    %vm176 = vcmp.eq.s32.totalorder %v174, 0
    %v177 = vxor.u32 %v171, 2147483648
    %v178 = vsel %vm176, %v170, %v177
    %vm179 = vcmp.eq.s32.totalorder %v174, 2
    %v180 = vxor.u32 %v170, 2147483648
    %v181 = vsel %vm179, %v180, %v171
    %v182 = vsel %vm175, %v178, %v181
    %v183 = vsel %vm172, nan, %v182
    %184 = vst [vmem:[#allocation5] sm:$0x3] %v183
    // Predicated region
    $region18: #{tpu_custom_call.1} parent=1 // pred_check
      _
    $region19: #{tpu_custom_call.1} parent=1 // pred_check_branch
      %186 = sbr.rel (0) target = $region21
    $region20: #{tpu_custom_call.1} parent=1 // pred_region
      %s188 = ssub.s32 32, 32
      %189 = vsyncadd [#allocation4], %s188
      %s191 = sshll.u32 [#allocation5], 4
      %s192 = int_to_ptr.vmem [resolvable:$true] %s191
      %194 = dma.vmem_to_hbm [thread:$0]  %s192, 32, %s3, [#allocation4]
    $region21: #{tpu_custom_call.1} parent=1 // pred_fallthru
      _
    // Predicated region
    $region22: #{tpu_custom_call.1} parent=1 // pred_check
      _
    $region23: #{tpu_custom_call.1} parent=1 // pred_check_branch
      %196 = sbr.rel (0) target = $region25
    $region24: #{tpu_custom_call.1} parent=1 // pred_region
      %197 = dma.done [#allocation4], 32
    $region25: #{tpu_custom_call.1} parent=1 // pred_fallthru
      _
    %198 = vsyncpa [#allocation3], 1
    %199 = vsyncpa [#allocation4], 1

</llo_original>
